<compile_context>
chip_gen: v5e
topology: v5e:2x2
jax: 0.10.0
libtpu: 0.0.40
codegen_flags: <defaults>
</compile_context>

<pallas_src>
import jax
import jax.numpy as jnp
from jax.experimental import pallas as pl
from jax.experimental.pallas import tpu as pltpu


def ff_kernel(x_ref, w1_ref, b1_ref, w2_ref, b2_ref, o_ref, acc_ref):
    # x_ref : (tm, E) bf16      w1_ref: (E, th) bf16   b1_ref: (1, th) f32
    # w2_ref: (th, E) bf16      b2_ref: (1, E)  f32
    # o_ref : (tm, E) f32       acc_ref: (tm, E) f32 scratch
    j = pl.program_id(1)

    @pl.when(j == 0)
    def _():
        acc_ref[...] = jnp.zeros_like(acc_ref)

    # First matmul: this H-tile's slice of the hidden layer, f32 accumulate.
    h = jnp.dot(x_ref[...], w1_ref[...], preferred_element_type=jnp.float32)
    h = jnp.maximum(h + b1_ref[...], 0.0)                       # bias + ReLU

    # Second matmul: accumulate this H-tile's contribution to the output.
    acc_ref[...] += jnp.dot(h.astype(w2_ref.dtype), w2_ref[...],
                            preferred_element_type=jnp.float32)

    @pl.when(j == pl.num_programs(1) - 1)
    def _():
        # Dropout -> identity (eval mode). Add output bias once, store block.
        o_ref[...] = (acc_ref[...] + b2_ref[...]).astype(o_ref.dtype)


def ff_forward(x, w1, b1, w2, b2, *, tm=256, th=512,
               vmem_limit_bytes=48 * 1024 * 1024):
    """x: (B, S, E). w1: (E, 4E), b1: (1, 4E), w2: (4E, E), b2: (1, E)."""
    B, S, E = x.shape
    H = w1.shape[1]
    assert E % 128 == 0, "embed dim must be lane-dense (multiple of 128)"
    assert H % 128 == 0, "hidden dim must be lane-dense (multiple of 128)"

    # Hidden-dim tile: bound VMEM regardless of H; fall back to full H for
    # small models or when th does not divide H evenly.
    th = min(th, H)
    if H % th != 0:
        th = H

    # Flatten rows and pad so M is a multiple of the row tile (ragged M).
    M = B * S
    tm = max(8, min(tm, ((M + 7) // 8) * 8))   # don't over-pad tiny inputs
    m_tiles = pl.cdiv(M, tm)
    M_pad = m_tiles * tm
    x2d = x.reshape(M, E)
    if M_pad != M:
        x2d = jnp.pad(x2d, ((0, M_pad - M), (0, 0)))

    # bf16 operands, f32 accumulation / biases.
    x_bf = x2d.astype(jnp.bfloat16)
    w1_bf = w1.astype(jnp.bfloat16)
    w2_bf = w2.astype(jnp.bfloat16)
    b1_f = b1.astype(jnp.float32)
    b2_f = b2.astype(jnp.float32)

    flops = 4 * M_pad * E * H  # two (M,E,H)-shaped matmuls, 2*M*E*H each
    bytes_accessed = (x_bf.size * 2 + w1_bf.size * 2 + w2_bf.size * 2
                      + b1_f.size * 4 + b2_f.size * 4 + M_pad * E * 4)

    out2d = pl.pallas_call(
        ff_kernel,
        out_shape=jax.ShapeDtypeStruct((M_pad, E), jnp.float32),
        grid_spec=pltpu.PrefetchScalarGridSpec(
            num_scalar_prefetch=0,
            grid=(m_tiles, H // th),
            in_specs=[
                pl.BlockSpec((tm, E), lambda i, j: (i, 0)),   # x rows (resident over j)
                pl.BlockSpec((E, th), lambda i, j: (0, j)),   # W1 column tile
                pl.BlockSpec((1, th), lambda i, j: (0, j)),   # b1 tile
                pl.BlockSpec((th, E), lambda i, j: (j, 0)),   # W2 row tile
                pl.BlockSpec((1, E), lambda i, j: (0, 0)),    # b2
            ],
            out_specs=pl.BlockSpec((tm, E), lambda i, j: (i, 0)),
            scratch_shapes=[pltpu.VMEM((tm, E), jnp.float32)],
        ),
        compiler_params=pltpu.CompilerParams(
            dimension_semantics=("parallel", "arbitrary"),
            vmem_limit_bytes=vmem_limit_bytes),
        cost_estimate=pl.CostEstimate(flops=flops, transcendentals=0,
                                      bytes_accessed=bytes_accessed),
    )(x_bf, w1_bf, b1_f, w2_bf, b2_f)

    return out2d[:M].reshape(B, S, E)


def ff_reference(x, w1, b1, w2, b2):
    """Reference following the same bf16-operand / f32-accumulate path."""
    x_bf = x.astype(jnp.bfloat16)
    h = jnp.dot(x_bf, w1.astype(jnp.bfloat16),
                preferred_element_type=jnp.float32) + b1[0]
    h = jnp.maximum(h, 0.0)
    y = jnp.dot(h.astype(jnp.bfloat16), w2.astype(jnp.bfloat16),
                preferred_element_type=jnp.float32) + b2[0]
    return y


if __name__ == "__main__":
    # Small but lane-dense shapes: batch=2, seq=72 (ragged vs tm), embed=128.
    B, S, E = 2, 72, 128
    H = 4 * E                   # hidden = 512

    key = jax.random.PRNGKey(0)
    kx, k1, k2, k3, k4 = jax.random.split(key, 5)

    x = jax.random.normal(kx, (B, S, E), dtype=jnp.float32)
    # Deterministic parameter init (nn.Linear weights stored here as (in, out)).
    w1 = jax.random.normal(k1, (E, H), dtype=jnp.float32) * (1.0 / jnp.sqrt(E))
    b1 = jax.random.normal(k2, (1, H), dtype=jnp.float32) * 0.01
    w2 = jax.random.normal(k3, (H, E), dtype=jnp.float32) * (1.0 / jnp.sqrt(H))
    b2 = jax.random.normal(k4, (1, E), dtype=jnp.float32) * 0.01

    # tm=128 / th=256 so the test exercises both grid axes (M pads 144->256,
    # H reduction runs 2 accumulation steps).
    out = ff_forward(x, w1, b1, w2, b2, tm=128, th=256)
    jax.block_until_ready(out)

    ref = ff_reference(x, w1, b1, w2, b2)
    assert out.shape == (B, S, E)
    assert jnp.allclose(out, ref, atol=1e-2, rtol=1e-2), (
        float(jnp.max(jnp.abs(out - ref))))

    print("KERNEL_OK")
</pallas_src>

<mosaic_0001>
module attributes {stable_mosaic.version = 11 : i64} {
  func.func @ff_kernel(%arg0: i32, %arg1: i32, %arg2: memref<128x128xbf16, #tpu.memory_space<vmem>>, %arg3: memref<128x256xbf16, #tpu.memory_space<vmem>>, %arg4: memref<1x256xf32, #tpu.memory_space<vmem>>, %arg5: memref<256x128xbf16, #tpu.memory_space<vmem>>, %arg6: memref<1x128xf32, #tpu.memory_space<vmem>>, %arg7: memref<128x128xf32, #tpu.memory_space<vmem>>, %arg8: memref<128x128xf32, #tpu.memory_space<vmem>>) attributes {dimension_semantics = [#tpu.dimension_semantics<parallel>, #tpu.dimension_semantics<arbitrary>], iteration_bounds = array<i64: 2, 2>, scalar_prefetch = 0 : i64, scratch_operands = 1 : i64, tpu.core_type = #tpu.core_type<tc>, window_params = [{transform_indices = @transform_0, window_bounds = array<i64: 128, 128>}, {transform_indices = @transform_1, window_bounds = array<i64: 128, 256>}, {transform_indices = @transform_2, window_bounds = array<i64: 1, 256>}, {transform_indices = @transform_3, window_bounds = array<i64: 256, 128>}, {pipeline_mode = #tpu.pipeline_mode<synchronous>, transform_indices = @transform_4, window_bounds = array<i64: 1, 128>}, {transform_indices = @transform_5, window_bounds = array<i64: 128, 128>}]} {
    %c0_i32 = arith.constant 0 : i32
    %0 = arith.cmpi eq, %arg1, %c0_i32 : i32
    %1 = arith.extui %0 : i1 to i32
    %c0_i32_0 = arith.constant 0 : i32
    %2 = arith.cmpi ne, %1, %c0_i32_0 : i32
    scf.if %2 {
      %cst_15 = arith.constant 0.000000e+00 : f32
      %20 = vector.broadcast %cst_15 : f32 to vector<128x128xf32>
      %c0_16 = arith.constant 0 : index
      %c0_17 = arith.constant 0 : index
      %21 = vector.load %arg8[%c0_16, %c0_17] : memref<128x128xf32, #tpu.memory_space<vmem>>, vector<128x128xf32>
      tpu.vector_store %arg8[%c0_16, %c0_17], %20 {strides = array<i32>} : memref<128x128xf32, #tpu.memory_space<vmem>>, vector<128x128xf32>,
    } else {
    }
    %c0 = arith.constant 0 : index
    %c0_1 = arith.constant 0 : index
    %3 = vector.load %arg2[%c0, %c0_1] : memref<128x128xbf16, #tpu.memory_space<vmem>>, vector<128x128xbf16>
    %c0_2 = arith.constant 0 : index
    %c0_3 = arith.constant 0 : index
    %4 = vector.load %arg3[%c0_2, %c0_3] : memref<128x256xbf16, #tpu.memory_space<vmem>>, vector<128x256xbf16>
    %cst = arith.constant dense<0.000000e+00> : vector<128x256xf32>
    %5 = tpu.matmul %3, %4, %cst {dimension_numbers = #tpu.dot_dimension_numbers<[1], [0], [0], [1], [0, 0, 1, 1], [], []>} : vector<128x128xbf16>, vector<128x256xbf16>, vector<128x256xf32> -> vector<128x256xf32>
    %c0_4 = arith.constant 0 : index
    %c0_5 = arith.constant 0 : index
    %6 = vector.load %arg4[%c0_4, %c0_5] : memref<1x256xf32, #tpu.memory_space<vmem>>, vector<1x256xf32>
    %7 = vector.broadcast %6 : vector<1x256xf32> to vector<128x256xf32>
    %8 = arith.addf %5, %7 : vector<128x256xf32>
    %cst_6 = arith.constant 0.000000e+00 : f32
    %9 = vector.broadcast %cst_6 : f32 to vector<128x256xf32>
    %10 = arith.maximumf %8, %9 : vector<128x256xf32>
    %c0_7 = arith.constant 0 : index
    %c0_8 = arith.constant 0 : index
    %11 = vector.load %arg8[%c0_7, %c0_8] : memref<128x128xf32, #tpu.memory_space<vmem>>, vector<128x128xf32>
    %12 = arith.truncf %10 : vector<128x256xf32> to vector<128x256xbf16>
    %c0_9 = arith.constant 0 : index
    %c0_10 = arith.constant 0 : index
    %13 = vector.load %arg5[%c0_9, %c0_10] : memref<256x128xbf16, #tpu.memory_space<vmem>>, vector<256x128xbf16>
    %cst_11 = arith.constant dense<0.000000e+00> : vector<128x128xf32>
    %14 = tpu.matmul %12, %13, %cst_11 {dimension_numbers = #tpu.dot_dimension_numbers<[1], [0], [0], [1], [0, 0, 1, 1], [], []>} : vector<128x256xbf16>, vector<256x128xbf16>, vector<128x128xf32> -> vector<128x128xf32>
    %15 = arith.addf %11, %14 : vector<128x128xf32>
    %c0_12 = arith.constant 0 : index
    %c0_13 = arith.constant 0 : index
    %16 = vector.load %arg8[%c0_12, %c0_13] : memref<128x128xf32, #tpu.memory_space<vmem>>, vector<128x128xf32>
    tpu.vector_store %arg8[%c0_12, %c0_13], %15 {strides = array<i32>} : memref<128x128xf32, #tpu.memory_space<vmem>>, vector<128x128xf32>,
    %c1_i32 = arith.constant 1 : i32
    %17 = arith.cmpi eq, %arg1, %c1_i32 : i32
    %18 = arith.extui %17 : i1 to i32
    %c0_i32_14 = arith.constant 0 : i32
    %19 = arith.cmpi ne, %18, %c0_i32_14 : i32
    scf.if %19 {
      %c0_15 = arith.constant 0 : index
      %c0_16 = arith.constant 0 : index
      %20 = vector.load %arg8[%c0_15, %c0_16] : memref<128x128xf32, #tpu.memory_space<vmem>>, vector<128x128xf32>
      %c0_17 = arith.constant 0 : index
      %c0_18 = arith.constant 0 : index
      %21 = vector.load %arg6[%c0_17, %c0_18] : memref<1x128xf32, #tpu.memory_space<vmem>>, vector<1x128xf32>
      %22 = vector.broadcast %21 : vector<1x128xf32> to vector<128x128xf32>
      %23 = arith.addf %20, %22 : vector<128x128xf32>
      %c0_19 = arith.constant 0 : index
      %c0_20 = arith.constant 0 : index
      %24 = vector.load %arg7[%c0_19, %c0_20] : memref<128x128xf32, #tpu.memory_space<vmem>>, vector<128x128xf32>
      tpu.vector_store %arg7[%c0_19, %c0_20], %23 {strides = array<i32>} : memref<128x128xf32, #tpu.memory_space<vmem>>, vector<128x128xf32>,
    } else {
    }
    return
  }
  func.func @transform_0(%arg0: i32, %arg1: i32) -> (i32, i32) {
    %c0_i32 = arith.constant 0 : i32
    %c0_i32_0 = arith.constant 0 : i32
    return %arg0, %c0_i32 : i32, i32
  }
  func.func @transform_1(%arg0: i32, %arg1: i32) -> (i32, i32) {
    %c0_i32 = arith.constant 0 : i32
    %c0_i32_0 = arith.constant 0 : i32
    return %c0_i32, %arg1 : i32, i32
  }
  func.func @transform_2(%arg0: i32, %arg1: i32) -> (i32, i32) {
    %c0_i32 = arith.constant 0 : i32
    %c0_i32_0 = arith.constant 0 : i32
    return %c0_i32, %arg1 : i32, i32
  }
  func.func @transform_3(%arg0: i32, %arg1: i32) -> (i32, i32) {
    %c0_i32 = arith.constant 0 : i32
    %c0_i32_0 = arith.constant 0 : i32
    return %arg1, %c0_i32 : i32, i32
  }
  func.func @transform_4(%arg0: i32, %arg1: i32) -> (i32, i32) {
    %c0_i32 = arith.constant 0 : i32
    %c0_i32_0 = arith.constant 0 : i32
    %c0_i32_1 = arith.constant 0 : i32
    return %c0_i32, %c0_i32_0 : i32, i32
  }
  func.func @transform_5(%arg0: i32, %arg1: i32) -> (i32, i32) {
    %c0_i32 = arith.constant 0 : i32
    %c0_i32_0 = arith.constant 0 : i32
    return %arg0, %c0_i32 : i32, i32
  }
}

</mosaic_0001>

<llo_original>
// kernel: tpu_custom_call.1
$region0: #{tpu_custom_call.1}
  #allocation0 [shape = 'u32[]', space=smem, size = 0x4, offset = 0x4, fixed_abs, tag = 'smem constant byte address 0x4 - core index']
  #allocation1 [shape = 'u32[72,128]{1,0:T(1,128)}', space=vmem, size = 0x9000, scoped, tag = 'internal scratch']
  #allocation2 [shape = 'f32[128,128]{1,0:T(8,128)}', space=vmem, size = 0x10000, scoped, tag = 'scratch operand']
  %s0 = inlined_call_operand.hbm [shape: bf16[256,128], index: 0, kind: input, shape index: {}]
  %s1 = inlined_call_operand.hbm [shape: bf16[128,512], index: 1, kind: input, shape index: {}]
  %s2 = inlined_call_operand.hbm [shape: f32[1,512], index: 2, kind: input, shape index: {}]
  %s3 = inlined_call_operand.hbm [shape: bf16[512,128], index: 3, kind: input, shape index: {}]
  %s4 = inlined_call_operand.vmem [shape: f32[1,128], index: 4, kind: input, shape index: {}]
  %s5 = inlined_call_operand.hbm [shape: f32[256,128], index: 5, kind: output, shape index: {}]
  %s6 = sld [smem:[#allocation0]]
  $region77: #{tpu_custom_call.1} parent=0
    _
  %s8 = ssub.s32 1, %s6
  %s9 = scalar_select 0, %s8, %s6
  $region1: #{tpu_custom_call.1} parent=0
    #allocation3 [shape = 'u8[65536]{0}', space=vmem, size = 0x10000, scoped, tag = 'input window, operand 0']
    #allocation4 [shape = 's32[2]{0}', space=sflag, size = 0x8, scoped, tag = 'scoped memory for tpu_custom_call.1']
    #allocation5 [shape = 's32[2]{0}', space=sflag, size = 0x8, scoped, tag = 'scoped memory for tpu_custom_call.1']
    #allocation6 [shape = 'u8[131072]{0}', space=vmem, size = 0x20000, scoped, tag = 'input window, operand 1']
    #allocation7 [shape = 's32[2]{0}', space=sflag, size = 0x8, scoped, tag = 'scoped memory for tpu_custom_call.1']
    #allocation8 [shape = 'u8[2048]{0}', space=vmem, size = 0x800, scoped, tag = 'input window, operand 2']
    #allocation9 [shape = 'u8[131072]{0}', space=vmem, size = 0x20000, scoped, tag = 'input window, operand 3']
    #allocation10 [shape = 's32[2]{0}', space=sflag, size = 0x8, scoped, tag = 'scoped memory for tpu_custom_call.1']
    #allocation11 [shape = 'u8[131072]{0}', space=vmem, size = 0x20000, scoped, tag = 'output window, operand 0']
    %10 = vsyncpa [#allocation4], 0
    %s11 = scalar_lea.sflag [#allocation4], 1
    %12 = vsyncpa %s11, 0
    %13 = vsyncpa [#allocation7], 0
    %s14 = scalar_lea.sflag [#allocation7], 1
    %15 = vsyncpa %s14, 0
    %16 = vsyncpa [#allocation10], 0
    %s17 = scalar_lea.sflag [#allocation10], 1
    %18 = vsyncpa %s17, 0
    %19 = vsyncpa [#allocation5], 0
    %s20 = scalar_lea.sflag [#allocation5], 1
    %21 = vsyncpa %s20, 0
    loop: start=0, step=1, limit=6
    $region2: #{tpu_custom_call.1} parent=1 // loop_pre_header
      _
    $region3: #{tpu_custom_call.1} parent=1 // loop_header
      %s23 = sphi 0, %s27
      %p24 = scmp.ge.s32.totalorder %s23, 6
      %s30 = sphi 0, %s42
      %s31 = sphi 0, %s38
      %s32 = sphi 0, %s30
      %s33 = sphi 0, %s31
      %s34 = sphi 0, %s32
      %s35 = sphi 0, %s33
      %s45 = sphi 0, %s47
      %s48 = sphi 0, %s45
      %s49 = sphi 0, %s48
      %s65 = sphi 0, %s49
      %s71 = sphi 0, %s73
      %s74 = sphi 0, %s71
      %s75 = sphi 0, %s74
      %s91 = sphi 0, %s75
      %s97 = sphi 0, %s99
      %s100 = sphi 0, %s97
      %s101 = sphi 0, %s100
      %s117 = sphi 0, %s101
      %s123 = sphi 0, %s125
      %s126 = sphi 0, %s123
      %s127 = sphi 0, %s126
      %s143 = sphi 0, %s127
      %s147 = sphi 0, %s147
      %s149 = sphi 0, %s147
      %s150 = sphi 0, %s149
      %s164 = sphi 0, %s150
      %s170 = sphi 0, %s172
      %s173 = sphi 0, %s170
      %s174 = sphi 0, %s173
      %s190 = sphi 0, %s174
    $region4: #{tpu_custom_call.1} parent=1 // loop_header_branch
      %26 = sbr.rel (%p24) target = $region8
    $region5: #{tpu_custom_call.1} parent=1 // loop_body
      %s28 = ssub.s32 %s23, 1
      %s29 = ssub.s32 %s23, 2
      %s36 = sadd.s32 1, %s31
      %p37 = scmp.ge.s32.totalorder %s36, 2
      %s38 = scalar_select %p37, 0, %s36
      %s39 = sadd.s32 1, %s30
      %s40 = scalar_select %p37, %s39, %s30
      %p41 = scmp.ge.s32.totalorder %s40, 2
      %s42 = scalar_select %p41, 0, %s40
      %s43 = ssub.s32 %s30, %s42
      %p44 = scmp.eq.s32.totalorder %s43, 0
      %s46 = sadd.s32 %s45, 1
      %s47 = scalar_select %p44, %s45, %s46
      %p50 = pneg %p44
      %p51 = scmp.eq.s32.totalorder %s23, 3
      %p52 = por %p50, %p51
      %p53 = scmp.ne.s32.totalorder %s45, %s48
      %p54 = scmp.eq.s32.totalorder %s23, 0
      %p55 = por %p53, %p54
      %p56 = scmp.ne.s32.totalorder %s45, %s48
      %p57 = scmp.eq.s32.totalorder %s28, 3
      %p58 = por %p56, %p57
      %p59 = scmp.ne.s32.totalorder %s48, %s49
      %p60 = scmp.eq.s32.totalorder %s28, 0
      %p61 = por %p59, %p60
      %p62 = scmp.ne.s32.totalorder %s48, %s49
      %p63 = scmp.eq.s32.totalorder %s29, 3
      %p64 = por %p62, %p63
      %p66 = scmp.ne.s32.totalorder %s49, %s65
      %p67 = scmp.eq.s32.totalorder %s29, 0
      %p68 = por %p66, %p67
      %s69 = ssub.s32 %s31, %s38
      %p70 = scmp.eq.s32.totalorder %s69, 0
      %s72 = sadd.s32 %s71, 1
      %s73 = scalar_select %p70, %s71, %s72
      %p76 = pneg %p70
      %p77 = scmp.eq.s32.totalorder %s23, 3
      %p78 = por %p76, %p77
      %p79 = scmp.ne.s32.totalorder %s71, %s74
      %p80 = scmp.eq.s32.totalorder %s23, 0
      %p81 = por %p79, %p80
      %p82 = scmp.ne.s32.totalorder %s71, %s74
      %p83 = scmp.eq.s32.totalorder %s28, 3
      %p84 = por %p82, %p83
      %p85 = scmp.ne.s32.totalorder %s74, %s75
      %p86 = scmp.eq.s32.totalorder %s28, 0
      %p87 = por %p85, %p86
      %p88 = scmp.ne.s32.totalorder %s74, %s75
      %p89 = scmp.eq.s32.totalorder %s29, 3
      %p90 = por %p88, %p89
      %p92 = scmp.ne.s32.totalorder %s75, %s91
      %p93 = scmp.eq.s32.totalorder %s29, 0
      %p94 = por %p92, %p93
      %s95 = ssub.s32 %s31, %s38
      %p96 = scmp.eq.s32.totalorder %s95, 0
      %s98 = sadd.s32 %s97, 1
      %s99 = scalar_select %p96, %s97, %s98
      %p102 = pneg %p96
      %p103 = scmp.eq.s32.totalorder %s23, 3
      %p104 = por %p102, %p103
      %p105 = scmp.ne.s32.totalorder %s97, %s100
      %p106 = scmp.eq.s32.totalorder %s23, 0
      %p107 = por %p105, %p106
      %p108 = scmp.ne.s32.totalorder %s97, %s100
      %p109 = scmp.eq.s32.totalorder %s28, 3
      %p110 = por %p108, %p109
      %p111 = scmp.ne.s32.totalorder %s100, %s101
      %p112 = scmp.eq.s32.totalorder %s28, 0
      %p113 = por %p111, %p112
      %p114 = scmp.ne.s32.totalorder %s100, %s101
      %p115 = scmp.eq.s32.totalorder %s29, 3
      %p116 = por %p114, %p115
      %p118 = scmp.ne.s32.totalorder %s101, %s117
      %p119 = scmp.eq.s32.totalorder %s29, 0
      %p120 = por %p118, %p119
      %s121 = ssub.s32 %s31, %s38
      %p122 = scmp.eq.s32.totalorder %s121, 0
      %s124 = sadd.s32 %s123, 1
      %s125 = scalar_select %p122, %s123, %s124
      %p128 = pneg %p122
      %p129 = scmp.eq.s32.totalorder %s23, 3
      %p130 = por %p128, %p129
      %p131 = scmp.ne.s32.totalorder %s123, %s126
      %p132 = scmp.eq.s32.totalorder %s23, 0
      %p133 = por %p131, %p132
      %p134 = scmp.ne.s32.totalorder %s123, %s126
      %p135 = scmp.eq.s32.totalorder %s28, 3
      %p136 = por %p134, %p135
      %p137 = scmp.ne.s32.totalorder %s126, %s127
      %p138 = scmp.eq.s32.totalorder %s28, 0
      %p139 = por %p137, %p138
      %p140 = scmp.ne.s32.totalorder %s126, %s127
      %p141 = scmp.eq.s32.totalorder %s29, 3
      %p142 = por %p140, %p141
      %p144 = scmp.ne.s32.totalorder %s127, %s143
      %p145 = scmp.eq.s32.totalorder %s29, 0
      %p146 = por %p144, %p145
      %s148 = sadd.s32 %s147, 1
      %p151 = scmp.eq.s32.totalorder %s23, 3
      %p152 = scmp.ne.s32.totalorder %s147, %s149
      %p153 = scmp.eq.s32.totalorder %s23, 0
      %p154 = por %p152, %p153
      %p155 = scmp.ne.s32.totalorder %s147, %s149
      %p156 = scmp.eq.s32.totalorder %s28, 3
      %p157 = por %p155, %p156
      %p158 = scmp.ne.s32.totalorder %s149, %s150
      %p159 = scmp.eq.s32.totalorder %s28, 0
      %p160 = por %p158, %p159
      %p161 = scmp.ne.s32.totalorder %s149, %s150
      %p162 = scmp.eq.s32.totalorder %s29, 3
      %p163 = por %p161, %p162
      %p165 = scmp.ne.s32.totalorder %s150, %s164
      %p166 = scmp.eq.s32.totalorder %s29, 0
      %p167 = por %p165, %p166
      %s168 = ssub.s32 %s30, %s42
      %p169 = scmp.eq.s32.totalorder %s168, 0
      %s171 = sadd.s32 %s170, 1
      %s172 = scalar_select %p169, %s170, %s171
      %p175 = pneg %p169
      %p176 = scmp.eq.s32.totalorder %s23, 3
      %p177 = por %p175, %p176
      %p178 = scmp.ne.s32.totalorder %s170, %s173
      %p179 = scmp.eq.s32.totalorder %s23, 0
      %p180 = por %p178, %p179
      %p181 = scmp.ne.s32.totalorder %s170, %s173
      %p182 = scmp.eq.s32.totalorder %s28, 3
      %p183 = por %p181, %p182
      %p184 = scmp.ne.s32.totalorder %s173, %s174
      %p185 = scmp.eq.s32.totalorder %s28, 0
      %p186 = por %p184, %p185
      %p187 = scmp.ne.s32.totalorder %s173, %s174
      %p188 = scmp.eq.s32.totalorder %s29, 3
      %p189 = por %p187, %p188
      %p191 = scmp.ne.s32.totalorder %s174, %s190
      %p192 = scmp.eq.s32.totalorder %s29, 0
      %p193 = por %p191, %p192
      %p194 = scmp.le.s32.totalorder 1, %s23
      %p195 = scmp.lt.s32.totalorder %s23, 5
      %p196 = pnand %p194, %p195
      %p197 = pneg %p196
      // Predicated region
      $region9: #{tpu_custom_call.1} parent=5 // pred_check
        _
      $region10: #{tpu_custom_call.1} parent=5 // pred_check_branch
        %199 = sbr.rel (%p196) target = $region12
      $region11: #{tpu_custom_call.1} parent=5 // pred_region
        %s200 = ssub.s32 %s23, 1
        // Predicated region
        $region13: #{tpu_custom_call.1} parent=11 // pred_check
          %p201 = pneg %p160
        $region14: #{tpu_custom_call.1} parent=11 // pred_check_branch
          %203 = sbr.rel (%p201) target = $region16
        $region15: #{tpu_custom_call.1} parent=11 // pred_region
          _
        $region16: #{tpu_custom_call.1} parent=11 // pred_fallthru
          _
      $region12: #{tpu_custom_call.1} parent=5 // pred_fallthru
        _
      %p204 = scmp.lt.s32.totalorder %s23, 4
      // Predicated region
      $region17: #{tpu_custom_call.1} parent=5 // pred_check
        %p205 = pneg %p204
      $region18: #{tpu_custom_call.1} parent=5 // pred_check_branch
        %207 = sbr.rel (%p205) target = $region20
      $region19: #{tpu_custom_call.1} parent=5 // pred_region
        // Predicated region
        $region21: #{tpu_custom_call.1} parent=19 // pred_check
          %p208 = pneg %p55
        $region22: #{tpu_custom_call.1} parent=19 // pred_check_branch
          %210 = sbr.rel (%p208) target = $region24
        $region23: #{tpu_custom_call.1} parent=19 // pred_region
          %s211 = sand.u32 %s45, 1
          %s212 = scalar_lea.sflag [#allocation4], %s211
          %s213 = sand.u32 %s45, 1
          %s214 = smul.addr %s213, 64
          %s215 = scalar_lea.vmem [#allocation3], %s214
          %s216 = smul.u32 16, %s30
          %218 = vsyncadd %s212, 0
          %s219 = smul.addr %s216, 4
          %s220 = scalar_lea.hbm %s0, %s219
          %s221 = sshll.u32 %s220, 4
          %s222 = int_to_ptr.hbm [resolvable:$true] %s221
          %s223 = sshll.u32 %s215, 4
          %s224 = int_to_ptr.vmem [resolvable:$true] %s223
          %229 = dma.hbm_to_vmem [thread:$0]  %s222, 1024, %s224, %s212, 64, 64, 4
        $region24: #{tpu_custom_call.1} parent=19 // pred_fallthru
          _
        // Predicated region
        $region25: #{tpu_custom_call.1} parent=19 // pred_check
          %p230 = pneg %p81
        $region26: #{tpu_custom_call.1} parent=19 // pred_check_branch
          %232 = sbr.rel (%p230) target = $region28
        $region27: #{tpu_custom_call.1} parent=19 // pred_region
          %s233 = sand.u32 %s23, 1
          %s234 = scalar_lea.sflag [#allocation7], %s233
          %s235 = sand.u32 %s71, 1
          %s236 = smul.addr %s235, 128
          %s237 = scalar_lea.vmem [#allocation6], %s236
          %s238 = smul.u32 2, %s31
          %240 = vsyncadd %s234, 0
          %s241 = smul.addr %s238, 4
          %s242 = scalar_lea.hbm %s1, %s241
          %s243 = sshll.u32 %s242, 4
          %s244 = int_to_ptr.hbm [resolvable:$true] %s243
          %s245 = sshll.u32 %s237, 4
          %s246 = int_to_ptr.vmem [resolvable:$true] %s245
          %251 = dma.hbm_to_vmem [thread:$0]  %s244, 2048, %s246, %s234, 256, 128, 8
        $region28: #{tpu_custom_call.1} parent=19 // pred_fallthru
          _
        // Predicated region
        $region29: #{tpu_custom_call.1} parent=19 // pred_check
          %p252 = pneg %p107
        $region30: #{tpu_custom_call.1} parent=19 // pred_check_branch
          %254 = sbr.rel (%p252) target = $region32
        $region31: #{tpu_custom_call.1} parent=19 // pred_region
          %s255 = sand.u32 %s23, 1
          %s256 = scalar_lea.sflag [#allocation7], %s255
          %s257 = sand.u32 %s97, 1
          %s258 = smul.addr %s257, 2
          %s259 = scalar_lea.vmem [#allocation8], %s258
          %s260 = smul.u32 2, %s31
          %262 = vsyncadd %s256, 0
          %s263 = scalar_lea.hbm %s2, %s260
          %s265 = sshll.u32 %s263, 4
          %s266 = int_to_ptr.hbm [resolvable:$true] %s265
          %s267 = sshll.u32 %s259, 4
          %s268 = int_to_ptr.vmem [resolvable:$true] %s267
          %270 = dma.hbm_to_vmem [thread:$0]  %s266, 32, %s268, %s256
        $region32: #{tpu_custom_call.1} parent=19 // pred_fallthru
          _
        // Predicated region
        $region33: #{tpu_custom_call.1} parent=19 // pred_check
          %p271 = pneg %p133
        $region34: #{tpu_custom_call.1} parent=19 // pred_check_branch
          %273 = sbr.rel (%p271) target = $region36
        $region35: #{tpu_custom_call.1} parent=19 // pred_region
          %s274 = sand.u32 %s123, 1
          %s275 = scalar_lea.sflag [#allocation10], %s274
          %s276 = sand.u32 %s123, 1
          %s277 = smul.addr %s276, 128
          %s278 = scalar_lea.vmem [#allocation9], %s277
          %s279 = smul.u32 32, %s31
          %281 = vsyncadd %s275, 0
          %s282 = smul.addr %s279, 4
          %s283 = scalar_lea.hbm %s3, %s282
          %s284 = sshll.u32 %s283, 4
          %s285 = int_to_ptr.hbm [resolvable:$true] %s284
          %s286 = sshll.u32 %s278, 4
          %s287 = int_to_ptr.vmem [resolvable:$true] %s286
          %292 = dma.hbm_to_vmem [thread:$0]  %s285, 2048, %s287, %s275, 64, 64, 4
        $region36: #{tpu_custom_call.1} parent=19 // pred_fallthru
          _
      $region20: #{tpu_custom_call.1} parent=5 // pred_fallthru
        _
      %p293 = scmp.le.s32.totalorder 1, %s23
      %p294 = scmp.lt.s32.totalorder %s23, 5
      %p295 = pnand %p293, %p294
      %p296 = pneg %p295
      // Predicated region
      $region37: #{tpu_custom_call.1} parent=5 // pred_check
        _
      $region38: #{tpu_custom_call.1} parent=5 // pred_check_branch
        %298 = sbr.rel (%p295) target = $region40
      $region39: #{tpu_custom_call.1} parent=5 // pred_region
        %s299 = ssub.s32 %s23, 1
        %s300 = sand.u32 %s48, 1
        %s301 = scalar_lea.sflag [#allocation4], %s300
        %s302 = sand.u32 %s48, 1
        %s303 = smul.addr %s302, 64
        %s304 = scalar_lea.vmem [#allocation3], %s303
        // Predicated region
        $region41: #{tpu_custom_call.1} parent=39 // pred_check
          %p305 = pneg %p61
        $region42: #{tpu_custom_call.1} parent=39 // pred_check_branch
          %307 = sbr.rel (%p305) target = $region44
        $region43: #{tpu_custom_call.1} parent=39 // pred_region
          %309 = dma.done %s301, 1024
        $region44: #{tpu_custom_call.1} parent=39 // pred_fallthru
          _
        %s310 = sand.u32 %s28, 1
        %s311 = scalar_lea.sflag [#allocation7], %s310
        %s312 = sand.u32 %s74, 1
        %s313 = smul.addr %s312, 128
        %s314 = scalar_lea.vmem [#allocation6], %s313
        // Predicated region
        $region45: #{tpu_custom_call.1} parent=39 // pred_check
          %p315 = pneg %p87
        $region46: #{tpu_custom_call.1} parent=39 // pred_check_branch
          %317 = sbr.rel (%p315) target = $region48
        $region47: #{tpu_custom_call.1} parent=39 // pred_region
          %319 = dma.done %s311, 2048
        $region48: #{tpu_custom_call.1} parent=39 // pred_fallthru
          _
        %s320 = sand.u32 %s28, 1
        %s321 = scalar_lea.sflag [#allocation7], %s320
        %s322 = sand.u32 %s100, 1
        %s323 = smul.addr %s322, 2
        %s324 = scalar_lea.vmem [#allocation8], %s323
        // Predicated region
        $region49: #{tpu_custom_call.1} parent=39 // pred_check
          %p325 = pneg %p113
        $region50: #{tpu_custom_call.1} parent=39 // pred_check_branch
          %327 = sbr.rel (%p325) target = $region52
        $region51: #{tpu_custom_call.1} parent=39 // pred_region
          %329 = dma.done %s321, 32
        $region52: #{tpu_custom_call.1} parent=39 // pred_fallthru
          _
        %s330 = sand.u32 %s126, 1
        %s331 = scalar_lea.sflag [#allocation10], %s330
        %s332 = sand.u32 %s126, 1
        %s333 = smul.addr %s332, 128
        %s334 = scalar_lea.vmem [#allocation9], %s333
        // Predicated region
        $region53: #{tpu_custom_call.1} parent=39 // pred_check
          %p335 = pneg %p139
        $region54: #{tpu_custom_call.1} parent=39 // pred_check_branch
          %337 = sbr.rel (%p335) target = $region56
        $region55: #{tpu_custom_call.1} parent=39 // pred_region
          %339 = dma.done %s331, 2048
        $region56: #{tpu_custom_call.1} parent=39 // pred_fallthru
          _
        %s340 = sand.u32 %s48, 1
        %s341 = scalar_lea.sflag [#allocation4], %s340
        %s342 = sand.u32 %s48, 1
        %s343 = smul.addr %s342, 64
        %s344 = scalar_lea.vmem [#allocation3], %s343
        %p345 = pneg %p61
        %p346 = pneg %p58
        %s347 = sand.u32 %s28, 1
        %s348 = scalar_lea.sflag [#allocation7], %s347
        %s349 = sand.u32 %s74, 1
        %s350 = smul.addr %s349, 128
        %s351 = scalar_lea.vmem [#allocation6], %s350
        %p352 = pneg %p87
        %p353 = pneg %p84
        %s354 = sand.u32 %s28, 1
        %s355 = scalar_lea.sflag [#allocation7], %s354
        %s356 = sand.u32 %s100, 1
        %s357 = smul.addr %s356, 2
        %s358 = scalar_lea.vmem [#allocation8], %s357
        %p359 = pneg %p113
        %p360 = pneg %p110
        %s361 = sand.u32 %s126, 1
        %s362 = scalar_lea.sflag [#allocation10], %s361
        %s363 = sand.u32 %s126, 1
        %s364 = smul.addr %s363, 128
        %s365 = scalar_lea.vmem [#allocation9], %s364
        %p366 = pneg %p139
        %p367 = pneg %p136
        %p368 = pneg %p160
        %p369 = pneg %p157
        %p370 = pneg %p186
        %p371 = pneg %p183
        %s372 = sand.u32 %s173, 1
        %s373 = scalar_lea.sflag [#allocation5], %s372
        %s374 = sand.u32 %s173, 1
        %s375 = smul.addr %s374, 128
        %s376 = scalar_lea.vmem [#allocation11], %s375
        %s377 = smul.u32 16, %s32
        %s378 = smul.u32 2, %s33
        %s379 = smul.u32 2, %s33
        %s380 = smul.u32 32, %s33
        %s381 = smul.u32 16, %s32
        %p382 = scmp.eq.s32.totalorder %s33, 0
        // Predicated region
        $region57: #{tpu_custom_call.1} parent=39 // pred_check
          %p383 = pneg %p382
        $region58: #{tpu_custom_call.1} parent=39 // pred_check_branch
          %385 = sbr.rel (%p383) target = $region60
        $region59: #{tpu_custom_call.1} parent=39 // pred_region
          %386 = vst [vmem:[#allocation2] sm:$0xff] 0.0
          %387 = vst [vmem:[#allocation2 + $0x8] sm:$0xff] 0.0
          %388 = vst [vmem:[#allocation2 + $0x10] sm:$0xff] 0.0
          %389 = vst [vmem:[#allocation2 + $0x18] sm:$0xff] 0.0
          %390 = vst [vmem:[#allocation2 + $0x20] sm:$0xff] 0.0
          %391 = vst [vmem:[#allocation2 + $0x28] sm:$0xff] 0.0
          %392 = vst [vmem:[#allocation2 + $0x30] sm:$0xff] 0.0
          %393 = vst [vmem:[#allocation2 + $0x38] sm:$0xff] 0.0
          %394 = vst [vmem:[#allocation2 + $0x40] sm:$0xff] 0.0
          %395 = vst [vmem:[#allocation2 + $0x48] sm:$0xff] 0.0
          %396 = vst [vmem:[#allocation2 + $0x50] sm:$0xff] 0.0
          %397 = vst [vmem:[#allocation2 + $0x58] sm:$0xff] 0.0
          %398 = vst [vmem:[#allocation2 + $0x60] sm:$0xff] 0.0
          %399 = vst [vmem:[#allocation2 + $0x68] sm:$0xff] 0.0
          %400 = vst [vmem:[#allocation2 + $0x70] sm:$0xff] 0.0
          %401 = vst [vmem:[#allocation2 + $0x78] sm:$0xff] 0.0
        $region60: #{tpu_custom_call.1} parent=39 // pred_fallthru
          _
        %v402 = vld [vmem:[%s304] sm:$0xf]
        %v403 = vld [vmem:[%s304 + $0x4] sm:$0xf]
        %v404 = vld [vmem:[%s304 + $0x8] sm:$0xf]
        %v405 = vld [vmem:[%s304 + $0xc] sm:$0xf]
        %v406 = vld [vmem:[%s304 + $0x10] sm:$0xf]
        %v407 = vld [vmem:[%s304 + $0x14] sm:$0xf]
        %v408 = vld [vmem:[%s304 + $0x18] sm:$0xf]
        %v409 = vld [vmem:[%s304 + $0x1c] sm:$0xf]
        %v410 = vld [vmem:[%s304 + $0x20] sm:$0xf]
        %v411 = vld [vmem:[%s304 + $0x24] sm:$0xf]
        %v412 = vld [vmem:[%s304 + $0x28] sm:$0xf]
        %v413 = vld [vmem:[%s304 + $0x2c] sm:$0xf]
        %v414 = vld [vmem:[%s304 + $0x30] sm:$0xf]
        %v415 = vld [vmem:[%s304 + $0x34] sm:$0xf]
        %v416 = vld [vmem:[%s304 + $0x38] sm:$0xf]
        %v417 = vld [vmem:[%s304 + $0x3c] sm:$0xf]
        %v418 = vld [vmem:[%s314] sm:$0xff]
        %v419 = vld [vmem:[%s314 + $0x8] sm:$0xff]
        %v420 = vld [vmem:[%s314 + $0x10] sm:$0xff]
        %v421 = vld [vmem:[%s314 + $0x18] sm:$0xff]
        %v422 = vld [vmem:[%s314 + $0x20] sm:$0xff]
        %v423 = vld [vmem:[%s314 + $0x28] sm:$0xff]
        %v424 = vld [vmem:[%s314 + $0x30] sm:$0xff]
        %v425 = vld [vmem:[%s314 + $0x38] sm:$0xff]
        %v426 = vld [vmem:[%s314 + $0x40] sm:$0xff]
        %v427 = vld [vmem:[%s314 + $0x48] sm:$0xff]
        %v428 = vld [vmem:[%s314 + $0x50] sm:$0xff]
        %v429 = vld [vmem:[%s314 + $0x58] sm:$0xff]
        %v430 = vld [vmem:[%s314 + $0x60] sm:$0xff]
        %v431 = vld [vmem:[%s314 + $0x68] sm:$0xff]
        %v432 = vld [vmem:[%s314 + $0x70] sm:$0xff]
        %v433 = vld [vmem:[%s314 + $0x78] sm:$0xff]
        %v434 = vld [vmem:[%s324] sm:$0x3]
        %v436 = vperm.slane %v434, 0
        %v437 = vperm.slane %v434, 1
        %v456 = vunpack.c.l.b16 %v402
        %v457 = vunpack.c.l.b16 %v403
        %v458 = vunpack.c.l.b16 %v404
        %v459 = vunpack.c.l.b16 %v405
        %v460 = vunpack.c.l.b16 %v406
        %v461 = vunpack.c.l.b16 %v407
        %v462 = vunpack.c.l.b16 %v408
        %v463 = vunpack.c.l.b16 %v409
        %v464 = vunpack.c.l.b16 %v410
        %v465 = vunpack.c.l.b16 %v411
        %v466 = vunpack.c.l.b16 %v412
        %v467 = vunpack.c.l.b16 %v413
        %v468 = vunpack.c.l.b16 %v414
        %v469 = vunpack.c.l.b16 %v415
        %v470 = vunpack.c.l.b16 %v416
        %v471 = vunpack.c.l.b16 %v417
        %v472 = vpack.c.b16 %v457, %v456
        %v473 = vpack.c.b16 %v459, %v458
        %v474 = vpack.c.b16 %v461, %v460
        %v475 = vpack.c.b16 %v463, %v462
        %v476 = vpack.c.b16 %v465, %v464
        %v477 = vpack.c.b16 %v467, %v466
        %v478 = vpack.c.b16 %v469, %v468
        %v479 = vpack.c.b16 %v471, %v470
        %v504 = vunpack.c.l.b16 %v418
        %v505 = vunpack.c.h.b16 %v418
        %v506 = vunpack.c.l.b16 %v419
        %v507 = vunpack.c.h.b16 %v419
        %v508 = vunpack.c.l.b16 %v420
        %v509 = vunpack.c.h.b16 %v420
        %v510 = vunpack.c.l.b16 %v421
        %v511 = vunpack.c.h.b16 %v421
        %v512 = vunpack.c.l.b16 %v422
        %v513 = vunpack.c.h.b16 %v422
        %v514 = vunpack.c.l.b16 %v423
        %v515 = vunpack.c.h.b16 %v423
        %v516 = vunpack.c.l.b16 %v424
        %v517 = vunpack.c.h.b16 %v424
        %v518 = vunpack.c.l.b16 %v425
        %v519 = vunpack.c.h.b16 %v425
        %v520 = vunpack.c.l.b16 %v426
        %v521 = vunpack.c.h.b16 %v426
        %v522 = vunpack.c.l.b16 %v427
        %v523 = vunpack.c.h.b16 %v427
        %v524 = vunpack.c.l.b16 %v428
        %v525 = vunpack.c.h.b16 %v428
        %v526 = vunpack.c.l.b16 %v429
        %v527 = vunpack.c.h.b16 %v429
        %v528 = vunpack.c.l.b16 %v430
        %v529 = vunpack.c.h.b16 %v430
        %v530 = vunpack.c.l.b16 %v431
        %v531 = vunpack.c.h.b16 %v431
        %v532 = vunpack.c.l.b16 %v432
        %v533 = vunpack.c.h.b16 %v432
        %v534 = vunpack.c.l.b16 %v433
        %v535 = vunpack.c.h.b16 %v433
        %v536 = vpack.c.b16 %v506, %v504
        %v537 = vpack.c.b16 %v507, %v505
        %v538 = vpack.c.b16 %v510, %v508
        %v539 = vpack.c.b16 %v511, %v509
        %v540 = vpack.c.b16 %v514, %v512
        %v541 = vpack.c.b16 %v515, %v513
        %v542 = vpack.c.b16 %v518, %v516
        %v543 = vpack.c.b16 %v519, %v517
        %v544 = vpack.c.b16 %v522, %v520
        %v545 = vpack.c.b16 %v523, %v521
        %v546 = vpack.c.b16 %v526, %v524
        %v547 = vpack.c.b16 %v527, %v525
        %v548 = vpack.c.b16 %v530, %v528
        %v549 = vpack.c.b16 %v531, %v529
        %v550 = vpack.c.b16 %v534, %v532
        %v551 = vpack.c.b16 %v535, %v533
        %568 = vmatpush.bf16.msra.mxu0 %v550
        %569 = vmatpush.bf16.msra.mxu0 %v548
        %570 = vmatpush.bf16.msra.mxu0 %v546
        %571 = vmatpush.bf16.msra.mxu0 %v544
        %572 = vmatpush.bf16.msra.mxu0 %v542
        %573 = vmatpush.bf16.msra.mxu0 %v540
        %574 = vmatpush.bf16.msra.mxu0 %v538
        %575 = vmatpush.bf16.msra.mxu0 %v536
        %576 = vmatmul.bf16.gmra.mxu0 %v472
        %v577 = vpop.f32.mrf.mxu0
        %v578 = vadd.f32 %v436, %v577
        %v579 = vpop.f32.mrf.mxu0
        %v580 = vadd.f32 %v436, %v579
        %581 = vmatmul.bf16.gmra.mxu0 %v473
        %v582 = vpop.f32.mrf.mxu0
        %v583 = vadd.f32 %v436, %v582
        %v584 = vpop.f32.mrf.mxu0
        %v585 = vadd.f32 %v436, %v584
        %586 = vmatmul.bf16.gmra.mxu0 %v474
        %v587 = vpop.f32.mrf.mxu0
        %v588 = vadd.f32 %v436, %v587
        %v589 = vpop.f32.mrf.mxu0
        %v590 = vadd.f32 %v436, %v589
        %591 = vmatmul.bf16.gmra.mxu0 %v475
        %v592 = vpop.f32.mrf.mxu0
        %v593 = vadd.f32 %v436, %v592
        %v594 = vpop.f32.mrf.mxu0
        %v595 = vadd.f32 %v436, %v594
        %596 = vmatmul.bf16.gmra.mxu0 %v476
        %v597 = vpop.f32.mrf.mxu0
        %v598 = vadd.f32 %v436, %v597
        %v599 = vpop.f32.mrf.mxu0
        %v600 = vadd.f32 %v436, %v599
        %601 = vmatmul.bf16.gmra.mxu0 %v477
        %v602 = vpop.f32.mrf.mxu0
        %v603 = vadd.f32 %v436, %v602
        %v604 = vpop.f32.mrf.mxu0
        %v605 = vadd.f32 %v436, %v604
        %606 = vmatmul.bf16.gmra.mxu0 %v478
        %v607 = vpop.f32.mrf.mxu0
        %v608 = vadd.f32 %v436, %v607
        %v609 = vpop.f32.mrf.mxu0
        %v610 = vadd.f32 %v436, %v609
        %611 = vmatmul.bf16.gmra.mxu0 %v479
        %v612 = vpop.f32.mrf.mxu0
        %v613 = vadd.f32 %v436, %v612
        %v614 = vpop.f32.mrf.mxu0
        %v615 = vadd.f32 %v436, %v614
        %616 = vdwg.mxu0
        %617 = vmatpush.bf16.msra.mxu0 %v551
        %618 = vmatpush.bf16.msra.mxu0 %v549
        %619 = vmatpush.bf16.msra.mxu0 %v547
        %620 = vmatpush.bf16.msra.mxu0 %v545
        %621 = vmatpush.bf16.msra.mxu0 %v543
        %622 = vmatpush.bf16.msra.mxu0 %v541
        %623 = vmatpush.bf16.msra.mxu0 %v539
        %624 = vmatpush.bf16.msra.mxu0 %v537
        %625 = vmatmul.bf16.gmra.mxu0 %v472
        %v626 = vpop.f32.mrf.mxu0
        %v627 = vadd.f32 %v437, %v626
        %v628 = vpop.f32.mrf.mxu0
        %v629 = vadd.f32 %v437, %v628
        %630 = vmatmul.bf16.gmra.mxu0 %v473
        %v631 = vpop.f32.mrf.mxu0
        %v632 = vadd.f32 %v437, %v631
        %v633 = vpop.f32.mrf.mxu0
        %v634 = vadd.f32 %v437, %v633
        %635 = vmatmul.bf16.gmra.mxu0 %v474
        %v636 = vpop.f32.mrf.mxu0
        %v637 = vadd.f32 %v437, %v636
        %v638 = vpop.f32.mrf.mxu0
        %v639 = vadd.f32 %v437, %v638
        %640 = vmatmul.bf16.gmra.mxu0 %v475
        %v641 = vpop.f32.mrf.mxu0
        %v642 = vadd.f32 %v437, %v641
        %v643 = vpop.f32.mrf.mxu0
        %v644 = vadd.f32 %v437, %v643
        %645 = vmatmul.bf16.gmra.mxu0 %v476
        %v646 = vpop.f32.mrf.mxu0
        %v647 = vadd.f32 %v437, %v646
        %v648 = vpop.f32.mrf.mxu0
        %v649 = vadd.f32 %v437, %v648
        %650 = vmatmul.bf16.gmra.mxu0 %v477
        %v651 = vpop.f32.mrf.mxu0
        %v652 = vadd.f32 %v437, %v651
        %v653 = vpop.f32.mrf.mxu0
        %v654 = vadd.f32 %v437, %v653
        %655 = vmatmul.bf16.gmra.mxu0 %v478
        %v656 = vpop.f32.mrf.mxu0
        %v657 = vadd.f32 %v437, %v656
        %v658 = vpop.f32.mrf.mxu0
        %v659 = vadd.f32 %v437, %v658
        %660 = vmatmul.bf16.gmra.mxu0 %v479
        %v661 = vpop.f32.mrf.mxu0
        %v662 = vadd.f32 %v437, %v661
        %v663 = vpop.f32.mrf.mxu0
        %v664 = vadd.f32 %v437, %v663
        %665 = vdwg.mxu0
        %v666 = vmax.f32 %v578, 0.0
        %v667 = vmax.f32 %v627, 0.0
        %v668 = vmax.f32 %v580, 0.0
        %v669 = vmax.f32 %v629, 0.0
        %v670 = vmax.f32 %v583, 0.0
        %v671 = vmax.f32 %v632, 0.0
        %v672 = vmax.f32 %v585, 0.0
        %v673 = vmax.f32 %v634, 0.0
        %v674 = vmax.f32 %v588, 0.0
        %v675 = vmax.f32 %v637, 0.0
        %v676 = vmax.f32 %v590, 0.0
        %v677 = vmax.f32 %v639, 0.0
        %v678 = vmax.f32 %v593, 0.0
        %v679 = vmax.f32 %v642, 0.0
        %v680 = vmax.f32 %v595, 0.0
        %v681 = vmax.f32 %v644, 0.0
        %v682 = vmax.f32 %v598, 0.0
        %v683 = vmax.f32 %v647, 0.0
        %v684 = vmax.f32 %v600, 0.0
        %v685 = vmax.f32 %v649, 0.0
        %v686 = vmax.f32 %v603, 0.0
        %v687 = vmax.f32 %v652, 0.0
        %v688 = vmax.f32 %v605, 0.0
        %v689 = vmax.f32 %v654, 0.0
        %v690 = vmax.f32 %v608, 0.0
        %v691 = vmax.f32 %v657, 0.0
        %v692 = vmax.f32 %v610, 0.0
        %v693 = vmax.f32 %v659, 0.0
        %v694 = vmax.f32 %v613, 0.0
        %v695 = vmax.f32 %v662, 0.0
        %v696 = vmax.f32 %v615, 0.0
        %v697 = vmax.f32 %v664, 0.0
        %v698 = vld [vmem:[#allocation2] sm:$0xff]
        %v699 = vld [vmem:[#allocation2 + $0x8] sm:$0xff]
        %v700 = vld [vmem:[#allocation2 + $0x10] sm:$0xff]
        %v701 = vld [vmem:[#allocation2 + $0x18] sm:$0xff]
        %v702 = vld [vmem:[#allocation2 + $0x20] sm:$0xff]
        %v703 = vld [vmem:[#allocation2 + $0x28] sm:$0xff]
        %v704 = vld [vmem:[#allocation2 + $0x30] sm:$0xff]
        %v705 = vld [vmem:[#allocation2 + $0x38] sm:$0xff]
        %v706 = vld [vmem:[#allocation2 + $0x40] sm:$0xff]
        %v707 = vld [vmem:[#allocation2 + $0x48] sm:$0xff]
        %v708 = vld [vmem:[#allocation2 + $0x50] sm:$0xff]
        %v709 = vld [vmem:[#allocation2 + $0x58] sm:$0xff]
        %v710 = vld [vmem:[#allocation2 + $0x60] sm:$0xff]
        %v711 = vld [vmem:[#allocation2 + $0x68] sm:$0xff]
        %v712 = vld [vmem:[#allocation2 + $0x70] sm:$0xff]
        %v713 = vld [vmem:[#allocation2 + $0x78] sm:$0xff]
        %v714 = vpack.c.bf16 %v668, %v666
        %v715 = vpack.c.bf16 %v669, %v667
        %v716 = vpack.c.bf16 %v672, %v670
        %v717 = vpack.c.bf16 %v673, %v671
        %v718 = vpack.c.bf16 %v676, %v674
        %v719 = vpack.c.bf16 %v677, %v675
        %v720 = vpack.c.bf16 %v680, %v678
        %v721 = vpack.c.bf16 %v681, %v679
        %v722 = vpack.c.bf16 %v684, %v682
        %v723 = vpack.c.bf16 %v685, %v683
        %v724 = vpack.c.bf16 %v688, %v686
        %v725 = vpack.c.bf16 %v689, %v687
        %v726 = vpack.c.bf16 %v692, %v690
        %v727 = vpack.c.bf16 %v693, %v691
        %v728 = vpack.c.bf16 %v696, %v694
        %v729 = vpack.c.bf16 %v697, %v695
        %v730 = vld [vmem:[%s334] sm:$0xf]
        %v731 = vld [vmem:[%s334 + $0x4] sm:$0xf]
        %v732 = vld [vmem:[%s334 + $0x8] sm:$0xf]
        %v733 = vld [vmem:[%s334 + $0xc] sm:$0xf]
        %v734 = vld [vmem:[%s334 + $0x10] sm:$0xf]
        %v735 = vld [vmem:[%s334 + $0x14] sm:$0xf]
        %v736 = vld [vmem:[%s334 + $0x18] sm:$0xf]
        %v737 = vld [vmem:[%s334 + $0x1c] sm:$0xf]
        %v738 = vld [vmem:[%s334 + $0x20] sm:$0xf]
        %v739 = vld [vmem:[%s334 + $0x24] sm:$0xf]
        %v740 = vld [vmem:[%s334 + $0x28] sm:$0xf]
        %v741 = vld [vmem:[%s334 + $0x2c] sm:$0xf]
        %v742 = vld [vmem:[%s334 + $0x30] sm:$0xf]
        %v743 = vld [vmem:[%s334 + $0x34] sm:$0xf]
        %v744 = vld [vmem:[%s334 + $0x38] sm:$0xf]
        %v745 = vld [vmem:[%s334 + $0x3c] sm:$0xf]
        %v746 = vld [vmem:[%s334 + $0x40] sm:$0xf]
        %v747 = vld [vmem:[%s334 + $0x44] sm:$0xf]
        %v748 = vld [vmem:[%s334 + $0x48] sm:$0xf]
        %v749 = vld [vmem:[%s334 + $0x4c] sm:$0xf]
        %v750 = vld [vmem:[%s334 + $0x50] sm:$0xf]
        %v751 = vld [vmem:[%s334 + $0x54] sm:$0xf]
        %v752 = vld [vmem:[%s334 + $0x58] sm:$0xf]
        %v753 = vld [vmem:[%s334 + $0x5c] sm:$0xf]
        %v754 = vld [vmem:[%s334 + $0x60] sm:$0xf]
        %v755 = vld [vmem:[%s334 + $0x64] sm:$0xf]
        %v756 = vld [vmem:[%s334 + $0x68] sm:$0xf]
        %v757 = vld [vmem:[%s334 + $0x6c] sm:$0xf]
        %v758 = vld [vmem:[%s334 + $0x70] sm:$0xf]
        %v759 = vld [vmem:[%s334 + $0x74] sm:$0xf]
        %v760 = vld [vmem:[%s334 + $0x78] sm:$0xf]
        %v761 = vld [vmem:[%s334 + $0x7c] sm:$0xf]
        %v794 = vunpack.c.l.b16 %v730
        %v795 = vunpack.c.l.b16 %v731
        %v796 = vunpack.c.l.b16 %v732
        %v797 = vunpack.c.l.b16 %v733
        %v798 = vunpack.c.l.b16 %v734
        %v799 = vunpack.c.l.b16 %v735
        %v800 = vunpack.c.l.b16 %v736
        %v801 = vunpack.c.l.b16 %v737
        %v802 = vunpack.c.l.b16 %v738
        %v803 = vunpack.c.l.b16 %v739
        %v804 = vunpack.c.l.b16 %v740
        %v805 = vunpack.c.l.b16 %v741
        %v806 = vunpack.c.l.b16 %v742
        %v807 = vunpack.c.l.b16 %v743
        %v808 = vunpack.c.l.b16 %v744
        %v809 = vunpack.c.l.b16 %v745
        %v810 = vunpack.c.l.b16 %v746
        %v811 = vunpack.c.l.b16 %v747
        %v812 = vunpack.c.l.b16 %v748
        %v813 = vunpack.c.l.b16 %v749
        %v814 = vunpack.c.l.b16 %v750
        %v815 = vunpack.c.l.b16 %v751
        %v816 = vunpack.c.l.b16 %v752
        %v817 = vunpack.c.l.b16 %v753
        %v818 = vunpack.c.l.b16 %v754
        %v819 = vunpack.c.l.b16 %v755
        %v820 = vunpack.c.l.b16 %v756
        %v821 = vunpack.c.l.b16 %v757
        %v822 = vunpack.c.l.b16 %v758
        %v823 = vunpack.c.l.b16 %v759
        %v824 = vunpack.c.l.b16 %v760
        %v825 = vunpack.c.l.b16 %v761
        %v826 = vpack.c.b16 %v795, %v794
        %v827 = vpack.c.b16 %v797, %v796
        %v828 = vpack.c.b16 %v799, %v798
        %v829 = vpack.c.b16 %v801, %v800
        %v830 = vpack.c.b16 %v803, %v802
        %v831 = vpack.c.b16 %v805, %v804
        %v832 = vpack.c.b16 %v807, %v806
        %v833 = vpack.c.b16 %v809, %v808
        %v834 = vpack.c.b16 %v811, %v810
        %v835 = vpack.c.b16 %v813, %v812
        %v836 = vpack.c.b16 %v815, %v814
        %v837 = vpack.c.b16 %v817, %v816
        %v838 = vpack.c.b16 %v819, %v818
        %v839 = vpack.c.b16 %v821, %v820
        %v840 = vpack.c.b16 %v823, %v822
        %v841 = vpack.c.b16 %v825, %v824
        %858 = vmatpush.bf16.msra.mxu0 %v833
        %859 = vmatpush.bf16.msra.mxu0 %v832
        %860 = vmatpush.bf16.msra.mxu0 %v831
        %861 = vmatpush.bf16.msra.mxu0 %v830
        %862 = vmatpush.bf16.msra.mxu0 %v829
        %863 = vmatpush.bf16.msra.mxu0 %v828
        %864 = vmatpush.bf16.msra.mxu0 %v827
        %865 = vmatpush.bf16.msra.mxu0 %v826
        %866 = vmatmul.bf16.gmra.mxu0 %v714
        %v867 = vpop.f32.mrf.mxu0
        %v868 = vadd.f32 0.0, %v867
        %v869 = vpop.f32.mrf.mxu0
        %v870 = vadd.f32 0.0, %v869
        %871 = vmatmul.bf16.gmra.mxu0 %v716
        %v872 = vpop.f32.mrf.mxu0
        %v873 = vadd.f32 0.0, %v872
        %v874 = vpop.f32.mrf.mxu0
        %v875 = vadd.f32 0.0, %v874
        %876 = vmatmul.bf16.gmra.mxu0 %v718
        %v877 = vpop.f32.mrf.mxu0
        %v878 = vadd.f32 0.0, %v877
        %v879 = vpop.f32.mrf.mxu0
        %v880 = vadd.f32 0.0, %v879
        %881 = vmatmul.bf16.gmra.mxu0 %v720
        %v882 = vpop.f32.mrf.mxu0
        %v883 = vadd.f32 0.0, %v882
        %v884 = vpop.f32.mrf.mxu0
        %v885 = vadd.f32 0.0, %v884
        %886 = vmatmul.bf16.gmra.mxu0 %v722
        %v887 = vpop.f32.mrf.mxu0
        %v888 = vadd.f32 0.0, %v887
        %v889 = vpop.f32.mrf.mxu0
        %v890 = vadd.f32 0.0, %v889
        %891 = vmatmul.bf16.gmra.mxu0 %v724
        %v892 = vpop.f32.mrf.mxu0
        %v893 = vadd.f32 0.0, %v892
        %v894 = vpop.f32.mrf.mxu0
        %v895 = vadd.f32 0.0, %v894
        %896 = vmatmul.bf16.gmra.mxu0 %v726
        %v897 = vpop.f32.mrf.mxu0
        %v898 = vadd.f32 0.0, %v897
        %v899 = vpop.f32.mrf.mxu0
        %v900 = vadd.f32 0.0, %v899
        %901 = vmatmul.bf16.gmra.mxu0 %v728
        %v902 = vpop.f32.mrf.mxu0
        %v903 = vadd.f32 0.0, %v902
        %v904 = vpop.f32.mrf.mxu0
        %v905 = vadd.f32 0.0, %v904
        %906 = vdwg.mxu0
        %907 = vmatpush.bf16.msra.mxu0 %v841
        %908 = vmatpush.bf16.msra.mxu0 %v840
        %909 = vmatpush.bf16.msra.mxu0 %v839
        %910 = vmatpush.bf16.msra.mxu0 %v838
        %911 = vmatpush.bf16.msra.mxu0 %v837
        %912 = vmatpush.bf16.msra.mxu0 %v836
        %913 = vmatpush.bf16.msra.mxu0 %v835
        %914 = vmatpush.bf16.msra.mxu0 %v834
        %915 = vmatmul.bf16.gmra.mxu0 %v715
        %v916 = vpop.f32.mrf.mxu0
        %v917 = vadd.f32 %v868, %v916
        %v918 = vpop.f32.mrf.mxu0
        %v919 = vadd.f32 %v870, %v918
        %920 = vmatmul.bf16.gmra.mxu0 %v717
        %v921 = vpop.f32.mrf.mxu0
        %v922 = vadd.f32 %v873, %v921
        %v923 = vpop.f32.mrf.mxu0
        %v924 = vadd.f32 %v875, %v923
        %925 = vmatmul.bf16.gmra.mxu0 %v719
        %v926 = vpop.f32.mrf.mxu0
        %v927 = vadd.f32 %v878, %v926
        %v928 = vpop.f32.mrf.mxu0
        %v929 = vadd.f32 %v880, %v928
        %930 = vmatmul.bf16.gmra.mxu0 %v721
        %v931 = vpop.f32.mrf.mxu0
        %v932 = vadd.f32 %v883, %v931
        %v933 = vpop.f32.mrf.mxu0
        %v934 = vadd.f32 %v885, %v933
        %935 = vmatmul.bf16.gmra.mxu0 %v723
        %v936 = vpop.f32.mrf.mxu0
        %v937 = vadd.f32 %v888, %v936
        %v938 = vpop.f32.mrf.mxu0
        %v939 = vadd.f32 %v890, %v938
        %940 = vmatmul.bf16.gmra.mxu0 %v725
        %v941 = vpop.f32.mrf.mxu0
        %v942 = vadd.f32 %v893, %v941
        %v943 = vpop.f32.mrf.mxu0
        %v944 = vadd.f32 %v895, %v943
        %945 = vmatmul.bf16.gmra.mxu0 %v727
        %v946 = vpop.f32.mrf.mxu0
        %v947 = vadd.f32 %v898, %v946
        %v948 = vpop.f32.mrf.mxu0
        %v949 = vadd.f32 %v900, %v948
        %950 = vmatmul.bf16.gmra.mxu0 %v729
        %v951 = vpop.f32.mrf.mxu0
        %v952 = vadd.f32 %v903, %v951
        %v953 = vpop.f32.mrf.mxu0
        %v954 = vadd.f32 %v905, %v953
        %955 = vdwg.mxu0
        %v956 = vadd.f32 %v698, %v917
        %v957 = vadd.f32 %v699, %v919
        %v958 = vadd.f32 %v700, %v922
        %v959 = vadd.f32 %v701, %v924
        %v960 = vadd.f32 %v702, %v927
        %v961 = vadd.f32 %v703, %v929
        %v962 = vadd.f32 %v704, %v932
        %v963 = vadd.f32 %v705, %v934
        %v964 = vadd.f32 %v706, %v937
        %v965 = vadd.f32 %v707, %v939
        %v966 = vadd.f32 %v708, %v942
        %v967 = vadd.f32 %v709, %v944
        %v968 = vadd.f32 %v710, %v947
        %v969 = vadd.f32 %v711, %v949
        %v970 = vadd.f32 %v712, %v952
        %v971 = vadd.f32 %v713, %v954
        %972 = vst [vmem:[#allocation2] sm:$0xff] %v956
        %973 = vst [vmem:[#allocation2 + $0x8] sm:$0xff] %v957
        %974 = vst [vmem:[#allocation2 + $0x10] sm:$0xff] %v958
        %975 = vst [vmem:[#allocation2 + $0x18] sm:$0xff] %v959
        %976 = vst [vmem:[#allocation2 + $0x20] sm:$0xff] %v960
        %977 = vst [vmem:[#allocation2 + $0x28] sm:$0xff] %v961
        %978 = vst [vmem:[#allocation2 + $0x30] sm:$0xff] %v962
        %979 = vst [vmem:[#allocation2 + $0x38] sm:$0xff] %v963
        %980 = vst [vmem:[#allocation2 + $0x40] sm:$0xff] %v964
        %981 = vst [vmem:[#allocation2 + $0x48] sm:$0xff] %v965
        %982 = vst [vmem:[#allocation2 + $0x50] sm:$0xff] %v966
        %983 = vst [vmem:[#allocation2 + $0x58] sm:$0xff] %v967
        %984 = vst [vmem:[#allocation2 + $0x60] sm:$0xff] %v968
        %985 = vst [vmem:[#allocation2 + $0x68] sm:$0xff] %v969
        %986 = vst [vmem:[#allocation2 + $0x70] sm:$0xff] %v970
        %987 = vst [vmem:[#allocation2 + $0x78] sm:$0xff] %v971
        %p988 = scmp.eq.s32.totalorder %s33, 1
        // Predicated region
        $region61: #{tpu_custom_call.1} parent=39 // pred_check
          %p989 = pneg %p988
        $region62: #{tpu_custom_call.1} parent=39 // pred_check_branch
          %991 = sbr.rel (%p989) target = $region64
        $region63: #{tpu_custom_call.1} parent=39 // pred_region
          %v992 = vld [vmem:[#allocation2] sm:$0xff]
          %v993 = vld [vmem:[#allocation2 + $0x8] sm:$0xff]
          %v994 = vld [vmem:[#allocation2 + $0x10] sm:$0xff]
          %v995 = vld [vmem:[#allocation2 + $0x18] sm:$0xff]
          %v996 = vld [vmem:[#allocation2 + $0x20] sm:$0xff]
          %v997 = vld [vmem:[#allocation2 + $0x28] sm:$0xff]
          %v998 = vld [vmem:[#allocation2 + $0x30] sm:$0xff]
          %v999 = vld [vmem:[#allocation2 + $0x38] sm:$0xff]
          %v1000 = vld [vmem:[#allocation2 + $0x40] sm:$0xff]
          %v1001 = vld [vmem:[#allocation2 + $0x48] sm:$0xff]
          %v1002 = vld [vmem:[#allocation2 + $0x50] sm:$0xff]
          %v1003 = vld [vmem:[#allocation2 + $0x58] sm:$0xff]
          %v1004 = vld [vmem:[#allocation2 + $0x60] sm:$0xff]
          %v1005 = vld [vmem:[#allocation2 + $0x68] sm:$0xff]
          %v1006 = vld [vmem:[#allocation2 + $0x70] sm:$0xff]
          %v1007 = vld [vmem:[#allocation2 + $0x78] sm:$0xff]
          %v1008 = vld [vmem:[%s4] sm:$0x1]
          %v1010 = vperm.slane %v1008, 0
          %v1012 = vadd.f32 %v992, %v1010
          %v1013 = vadd.f32 %v993, %v1010
          %v1014 = vadd.f32 %v994, %v1010
          %v1015 = vadd.f32 %v995, %v1010
          %v1016 = vadd.f32 %v996, %v1010
          %v1017 = vadd.f32 %v997, %v1010
          %v1018 = vadd.f32 %v998, %v1010
          %v1019 = vadd.f32 %v999, %v1010
          %v1020 = vadd.f32 %v1000, %v1010
          %v1021 = vadd.f32 %v1001, %v1010
          %v1022 = vadd.f32 %v1002, %v1010
          %v1023 = vadd.f32 %v1003, %v1010
          %v1024 = vadd.f32 %v1004, %v1010
          %v1025 = vadd.f32 %v1005, %v1010
          %v1026 = vadd.f32 %v1006, %v1010
          %v1027 = vadd.f32 %v1007, %v1010
          %1028 = vst [vmem:[%s376] sm:$0xff] %v1012
          %1029 = vst [vmem:[%s376 + $0x8] sm:$0xff] %v1013
          %1030 = vst [vmem:[%s376 + $0x10] sm:$0xff] %v1014
          %1031 = vst [vmem:[%s376 + $0x18] sm:$0xff] %v1015
          %1032 = vst [vmem:[%s376 + $0x20] sm:$0xff] %v1016
          %1033 = vst [vmem:[%s376 + $0x28] sm:$0xff] %v1017
          %1034 = vst [vmem:[%s376 + $0x30] sm:$0xff] %v1018
          %1035 = vst [vmem:[%s376 + $0x38] sm:$0xff] %v1019
          %1036 = vst [vmem:[%s376 + $0x40] sm:$0xff] %v1020
          %1037 = vst [vmem:[%s376 + $0x48] sm:$0xff] %v1021
          %1038 = vst [vmem:[%s376 + $0x50] sm:$0xff] %v1022
          %1039 = vst [vmem:[%s376 + $0x58] sm:$0xff] %v1023
          %1040 = vst [vmem:[%s376 + $0x60] sm:$0xff] %v1024
          %1041 = vst [vmem:[%s376 + $0x68] sm:$0xff] %v1025
          %1042 = vst [vmem:[%s376 + $0x70] sm:$0xff] %v1026
          %1043 = vst [vmem:[%s376 + $0x78] sm:$0xff] %v1027
        $region64: #{tpu_custom_call.1} parent=39 // pred_fallthru
          _
        %s1044 = sand.u32 %s173, 1
        %s1045 = scalar_lea.sflag [#allocation5], %s1044
        %s1046 = sand.u32 %s173, 1
        %s1047 = smul.addr %s1046, 128
        %s1048 = scalar_lea.vmem [#allocation11], %s1047
        // Predicated region
        $region65: #{tpu_custom_call.1} parent=39 // pred_check
          %p1049 = pneg %p183
        $region66: #{tpu_custom_call.1} parent=39 // pred_check_branch
          %1051 = sbr.rel (%p1049) target = $region68
        $region67: #{tpu_custom_call.1} parent=39 // pred_region
          %s1052 = smul.u32 16, %s32
          %1054 = vsyncadd %s1045, 0
          %s1055 = smul.addr %s1052, 8
          %s1056 = scalar_lea.hbm %s5, %s1055
          %s1057 = sshll.u32 %s1048, 4
          %s1058 = int_to_ptr.vmem [resolvable:$true] %s1057
          %s1059 = sshll.u32 %s1056, 4
          %s1060 = int_to_ptr.hbm [resolvable:$true] %s1059
          %1065 = dma.vmem_to_hbm [thread:$0]  %s1058, 2048, %s1060, %s1045, 128, 128, 8
        $region68: #{tpu_custom_call.1} parent=39 // pred_fallthru
          _
      $region40: #{tpu_custom_call.1} parent=5 // pred_fallthru
        _
      %p1066 = scmp.le.s32.totalorder 2, %s23
      // Predicated region
      $region69: #{tpu_custom_call.1} parent=5 // pred_check
        %p1067 = pneg %p1066
      $region70: #{tpu_custom_call.1} parent=5 // pred_check_branch
        %1069 = sbr.rel (%p1067) target = $region72
      $region71: #{tpu_custom_call.1} parent=5 // pred_region
        %s1070 = ssub.s32 %s23, 2
        // Predicated region
        $region73: #{tpu_custom_call.1} parent=71 // pred_check
          %p1071 = pneg %p189
        $region74: #{tpu_custom_call.1} parent=71 // pred_check_branch
          %1073 = sbr.rel (%p1071) target = $region76
        $region75: #{tpu_custom_call.1} parent=71 // pred_region
          %s1074 = sand.u32 %s174, 1
          %s1075 = scalar_lea.sflag [#allocation5], %s1074
          %s1076 = sand.u32 %s174, 1
          %s1077 = smul.addr %s1076, 128
          %s1078 = scalar_lea.vmem [#allocation11], %s1077
          %1080 = dma.done %s1075, 2048
        $region76: #{tpu_custom_call.1} parent=71 // pred_fallthru
          _
      $region72: #{tpu_custom_call.1} parent=5 // pred_fallthru
        _
    $region6: #{tpu_custom_call.1} parent=1 // loop_footer
      %s27 = sadd.s32 1, %s23
    $region7: #{tpu_custom_call.1} parent=1 // loop_footer_branch
      %22 = sbr.rel target = $region3
    $region8: #{tpu_custom_call.1} parent=1 // loop_exit
      _
    %1081 = vsyncpa [#allocation4], 1
    %s1082 = scalar_lea.sflag [#allocation4], 1
    %1083 = vsyncpa %s1082, 1
    %1084 = vsyncpa [#allocation7], 1
    %s1085 = scalar_lea.sflag [#allocation7], 1
    %1086 = vsyncpa %s1085, 1
    %1087 = vsyncpa [#allocation10], 1
    %s1088 = scalar_lea.sflag [#allocation10], 1
    %1089 = vsyncpa %s1088, 1
    %1090 = vsyncpa [#allocation5], 1
    %s1091 = scalar_lea.sflag [#allocation5], 1
    %1092 = vsyncpa %s1091, 1

</llo_original>
